<compile_context>
chip_gen: v5e
topology: v5e:2x2
jax: 0.10.0
libtpu: 0.0.40
codegen_flags: <defaults>
</compile_context>

<pallas_src>
from functools import partial

import numpy as np

import jax
import jax.numpy as jnp
from jax.experimental import pallas as pl
from jax.experimental.pallas import tpu as pltpu

HIDDEN = 32                    # H (config.hidden_size)
H2 = HIDDEN // 2               # FFNN output width per branch
D2 = 2 * H2                    # biaffine input width (= HIDDEN)
N_REL = 2                      # relation classes
N_ENT_PAD = 8                  # entity-label one-hot width (3 real labels, lane-padded)
R_BUCKET = 128                 # relation-pair row bucket (multiple of 128)

# ---- bf16 weight-slab row offsets (slab is 128 lanes wide) -------------------
_W1_R0, _W1_R1 = 0, 2 * HIDDEN                       # W1^T  (2H, 4H) = (64, 128)
_W2_R0, _W2_R1 = _W1_R1, _W1_R1 + D2                 # W2^T  (D2, 2H) = (32, 64)
_UC_R0, _UC_R1 = _W2_R1, _W2_R1 + N_REL * D2         # Ucat^T (N*D2, D2) = (64, 32)
_WF_R0, _WF_R1 = _UC_R1, _UC_R1 + N_REL              # Wf^T   (N, (N+1)*D2) = (2, 96)
_WSLAB_ROWS = ((_WF_R1 + 7) // 8) * 8                # 168

# ---- f32 aux-slab (emb^T + bias columns), 8 lanes wide -----------------------
_EMB_R0, _EMB_R1 = 0, HIDDEN                         # entity_emb^T (H, 3) in cols 0:3
_B1_R0, _B1_R1 = _EMB_R1, _EMB_R1 + 2 * HIDDEN       # b1 (64,) in col 0
_B2_R0, _B2_R1 = _B1_R1, _B1_R1 + D2                 # b2 (32,) in col 0
_BL_R0, _BL_R1 = _B2_R1, _B2_R1 + N_REL              # bl (2,)  in col 0
_AUX_ROWS = ((_BL_R1 + 7) // 8) * 8                  # 136


# -----------------------------------------------------------------------------
# Fused kernel: in-kernel gather -> block-diag FFNN -> biaffine -> per-row CE
# Everything is computed in a transposed (features x relation-rows) layout.
# -----------------------------------------------------------------------------
def _fused_kernel(pair_idx_ref, pair_lab_ref, rel_lab_ref, hs_t_ref,
                  wslab_ref, aux_ref, logits_ref, nll_ref):
    f32 = jnp.float32
    bf16 = jnp.bfloat16

    hs_t = hs_t_ref[0]                                     # (H, Kw)  f32
    kw = hs_t.shape[1]
    pair_idx = pair_idx_ref[0]                             # (1, 2M) int32  [head | tail]
    pair_lab = pair_lab_ref[0]                             # (1, 2M) int32
    rel_lab = rel_lab_ref[0]                               # (1, M)  int32 (-1 = padded)
    two_m = pair_idx.shape[1]
    m = two_m // 2

    # --- in-kernel row gather: one-hot (built along lanes) @ transposed tables (MXU)
    k_iota = jax.lax.broadcasted_iota(jnp.int32, (kw, two_m), 0)
    oh_hid = jnp.where(k_iota == pair_idx, 1.0, 0.0).astype(f32)        # (Kw, 2M)
    hid_t = jnp.dot(hs_t, oh_hid, preferred_element_type=f32)           # (H, 2M)

    e_iota = jax.lax.broadcasted_iota(jnp.int32, (N_ENT_PAD, two_m), 0)
    oh_lab = jnp.where(e_iota == pair_lab, 1.0, 0.0).astype(f32)        # (8, 2M)
    emb_t = aux_ref[_EMB_R0:_EMB_R1, 0:N_ENT_PAD]                       # (H, 8) f32
    lab_t = jnp.dot(emb_t, oh_lab, preferred_element_type=f32)          # (H, 2M)

    # x^T = [head_hidden; head_label; tail_hidden; tail_label]  -> (4H, M)
    x_t = jnp.concatenate([hid_t[:, :m], lab_t[:, :m],
                           hid_t[:, m:], lab_t[:, m:]], axis=0)

    # --- fused block-diagonal head/tail FFNN: Linear -> ReLU -> (Dropout=id) -> Linear -> ReLU
    w1_t = wslab_ref[_W1_R0:_W1_R1, :]                                  # (2H, 4H) bf16
    w2_t = wslab_ref[_W2_R0:_W2_R1, 0:2 * HIDDEN]                       # (D2, 2H) bf16
    b1 = aux_ref[_B1_R0:_B1_R1, 0:1]                                    # (2H, 1)  f32
    b2 = aux_ref[_B2_R0:_B2_R1, 0:1]                                    # (D2, 1)  f32

    h_t = jnp.dot(w1_t, x_t.astype(bf16), preferred_element_type=f32) + b1
    h_t = jnp.maximum(h_t, 0.0)                                         # (2H, M)
    o_t = jnp.dot(w2_t, h_t.astype(bf16), preferred_element_type=f32) + b2
    o_t = jnp.maximum(o_t, 0.0)                                         # (D2, M): [:H2]=heads, [H2:]=tails

    # --- biaffine: bilinear + linear collapsed into one final matmul
    uc_t = wslab_ref[_UC_R0:_UC_R1, 0:D2]                               # (N*D2, D2) bf16
    wf_t = wslab_ref[_WF_R0:_WF_R1, 0:(N_REL + 1) * D2]                 # (N, (N+1)*D2) bf16
    bl = aux_ref[_BL_R0:_BL_R1, 0:1]                                    # (N, 1) f32

    o_bf = o_t.astype(bf16)
    t_t = jnp.dot(uc_t, o_bf, preferred_element_type=f32)               # (N*D2, M)
    p_t = t_t * jnp.concatenate([o_t] * N_REL, axis=0)                  # (N*D2, M)
    phi_t = jnp.concatenate([p_t, o_t], axis=0)                         # ((N+1)*D2, M)
    logits_t = jnp.dot(wf_t, phi_t.astype(bf16),
                       preferred_element_type=f32) + bl                 # (N, M) lane-dense
    logits_ref[0] = logits_t

    # --- masked per-row cross-entropy for 2 classes, all on (1, M) lane-dense rows
    l0 = logits_t[0:1, :]
    l1 = logits_t[1:2, :]
    valid = jnp.where(rel_lab >= 0, 1.0, 0.0).astype(f32)
    picked = jnp.where(rel_lab == 1, l1, l0)
    mx = jnp.maximum(l0, l1)
    lse = mx + jnp.log(jnp.exp(l0 - mx) + jnp.exp(l1 - mx))
    nll_ref[0] = valid * (lse - picked)


def _fused_relation_head(pair_idx, pair_lab, rel_lab, hs_t, wslab, aux):
    n_blocks, _, two_m = pair_idx.shape
    m = two_m // 2
    _, h, kw = hs_t.shape

    return pl.pallas_call(
        _fused_kernel,
        grid=(n_blocks,),
        in_specs=[
            pl.BlockSpec((1, 1, two_m), lambda i: (i, 0, 0)),
            pl.BlockSpec((1, 1, two_m), lambda i: (i, 0, 0)),
            pl.BlockSpec((1, 1, m), lambda i: (i, 0, 0)),
            pl.BlockSpec((1, h, kw), lambda i: (i, 0, 0)),
            pl.BlockSpec(wslab.shape, lambda i: (0, 0)),
            pl.BlockSpec(aux.shape, lambda i: (0, 0)),
        ],
        out_specs=(
            pl.BlockSpec((1, N_REL, m), lambda i: (i, 0, 0)),
            pl.BlockSpec((1, 1, m), lambda i: (i, 0, 0)),
        ),
        out_shape=(
            jax.ShapeDtypeStruct((n_blocks, N_REL, m), jnp.float32),
            jax.ShapeDtypeStruct((n_blocks, 1, m), jnp.float32),
        ),
        compiler_params=pltpu.CompilerParams(dimension_semantics=("parallel",)),
    )(pair_idx, pair_lab, rel_lab, hs_t, wslab, aux)


# -----------------------------------------------------------------------------
# Jitted device wrapper: hidden_states -> transposed per-block slabs, one kernel
# call, per-doc-mean / batch-sum CE, logits back in (B, R, n_out) for decoding.
# -----------------------------------------------------------------------------
@partial(jax.jit, static_argnames=("b_blk",))
def _device_forward(hidden_states, pair_idx, pair_lab, rel_lab, wslab, aux, *, b_blk):
    batch, n_words, h = hidden_states.shape
    n_blocks = pair_idx.shape[0]
    m = rel_lab.shape[-1]
    r_pad = m // b_blk
    b_pad = n_blocks * b_blk

    hs = jnp.pad(hidden_states.astype(jnp.float32),
                 ((0, b_pad - batch), (0, 0), (0, 0)))
    hs_t = hs.reshape(n_blocks, b_blk, n_words, h).transpose(0, 3, 1, 2) \
             .reshape(n_blocks, h, b_blk * n_words)                     # (blk, H, Kw)

    logits_t, nll = _fused_relation_head(pair_idx, pair_lab, rel_lab, hs_t, wslab, aux)

    # loss = sum over docs of per-doc mean CE (matches `loss += CE(logits_b, labels_b)`)
    nll_doc = nll.reshape(b_pad, r_pad)
    valid = jnp.where(rel_lab.reshape(b_pad, r_pad) >= 0, 1.0, 0.0)
    per_doc = jnp.sum(nll_doc, -1) / jnp.maximum(jnp.sum(valid, -1), 1.0)
    total_loss = jnp.sum(per_doc)

    logits = logits_t.reshape(n_blocks, N_REL, b_blk, r_pad) \
                     .transpose(0, 2, 3, 1).reshape(b_pad, r_pad, N_REL)[:batch]
    return logits, total_loss


# -----------------------------------------------------------------------------
# Decoder (Python wrapper mirroring the PyTorch module)
# -----------------------------------------------------------------------------
class RegionExtractionDecoderPallas:
    def __init__(self, hidden_size, key):
        assert hidden_size == HIDDEN
        h, h2, d2 = hidden_size, hidden_size // 2, 2 * (hidden_size // 2)
        ks = jax.random.split(key, 12)
        s = 0.1
        self.hidden_size = h
        entity_emb = jax.random.normal(ks[0], (3, h), jnp.float32) * s

        wh1 = jax.random.normal(ks[1], (2 * h, h), jnp.float32) * s
        bh1 = jax.random.normal(ks[2], (h,), jnp.float32) * s
        wh2 = jax.random.normal(ks[3], (h, h2), jnp.float32) * s
        bh2 = jax.random.normal(ks[4], (h2,), jnp.float32) * s
        wt1 = jax.random.normal(ks[5], (2 * h, h), jnp.float32) * s
        bt1 = jax.random.normal(ks[6], (h,), jnp.float32) * s
        wt2 = jax.random.normal(ks[7], (h, h2), jnp.float32) * s
        bt2 = jax.random.normal(ks[8], (h2,), jnp.float32) * s

        # BiaffineAttention(h2, 2): bilinear (2, h2, h2) no bias, linear (2*h2 -> 2) + bias
        u = jax.random.normal(ks[9], (N_REL, h2, h2), jnp.float32) * s
        wl = jax.random.normal(ks[10], (d2, N_REL), jnp.float32) * s
        bl = jax.random.normal(ks[11], (N_REL,), jnp.float32) * s

        # fused block-diagonal FFNN (head branch | tail branch share one matmul chain)
        w1 = jnp.zeros((4 * h, 2 * h), jnp.float32)
        w1 = w1.at[:2 * h, :h].set(wh1).at[2 * h:, h:].set(wt1)
        b1 = jnp.concatenate([bh1, bt1])                                # (2h,)
        w2 = jnp.zeros((2 * h, d2), jnp.float32)
        w2 = w2.at[:h, :h2].set(wh2).at[h:, h2:].set(wt2)
        b2 = jnp.concatenate([bh2, bt2])                                # (d2,)

        # bilinear embedded as o @ ucat with o = [heads | tails]; class sums via sel
        ubig = jnp.zeros((N_REL, d2, d2), jnp.float32)
        ubig = ubig.at[:, :h2, h2:].set(u)
        ucat = jnp.transpose(ubig, (1, 0, 2)).reshape(d2, N_REL * d2)   # (d2, N*d2)
        sel = jnp.kron(jnp.eye(N_REL, dtype=jnp.float32),
                       jnp.ones((d2, 1), jnp.float32))                  # (N*d2, N)
        wf = jnp.concatenate([sel, wl], axis=0)                         # ((N+1)*d2, N)

        # one bf16, lane-padded slab holding all transposed matrix weights
        wslab = jnp.zeros((_WSLAB_ROWS, 128), jnp.float32)
        wslab = wslab.at[_W1_R0:_W1_R1, :4 * h].set(w1.T)
        wslab = wslab.at[_W2_R0:_W2_R1, :2 * h].set(w2.T)
        wslab = wslab.at[_UC_R0:_UC_R1, :d2].set(ucat.T)
        wslab = wslab.at[_WF_R0:_WF_R1, :(N_REL + 1) * d2].set(wf.T)
        self.wslab = wslab.astype(jnp.bfloat16)

        # one small f32 slab: entity_emb^T + bias columns
        aux = jnp.zeros((_AUX_ROWS, N_ENT_PAD), jnp.float32)
        aux = aux.at[_EMB_R0:_EMB_R1, :3].set(entity_emb.T)
        aux = aux.at[_B1_R0:_B1_R1, 0].set(b1)
        aux = aux.at[_B2_R0:_B2_R1, 0].set(b2)
        aux = aux.at[_BL_R0:_BL_R1, 0].set(bl)
        self.aux = aux

    # ---- pure-Python data wrangling (identical to the PyTorch reference) ----
    def build_relation(self, relations, entities):
        batch_size = len(relations)
        new_relations = []
        for b in range(batch_size):
            if len(entities[b]['start']) <= 2:
                entities[b] = {'end': [1, 1], 'label': [0, 0], 'start': [0, 0]}
            all_possible = set(
                (i, j)
                for i in range(len(entities[b]['label']))
                for j in range(len(entities[b]['label']))
                if entities[b]['label'][i] == 1 and entities[b]['label'][j] == 2
            )
            if len(all_possible) == 0:
                all_possible = {(0, 1)}
            positive = set(zip(relations[b]['head'], relations[b]['tail']))
            negative = all_possible - positive
            positive = set(i for i in positive if i in all_possible)
            reordered = list(positive) + list(negative)
            rpd = {
                'head': [i[0] for i in reordered],
                'tail': [i[1] for i in reordered],
                'label': [1] * len(positive) + [0] * (len(reordered) - len(positive)),
            }
            assert len(rpd['head']) != 0
            new_relations.append(rpd)
        return new_relations, entities

    def get_predicted_relations(self, logits, relations, entities):
        pred_relations = []
        for i, pred_label in enumerate(logits.argmax(-1)):
            if pred_label != 1:
                continue
            try:
                rel = {}
                rel['head_id'] = relations['head'][i]
                rel['head'] = (entities['start'][rel['head_id']], entities['end'][rel['head_id']])
                rel['head_type'] = entities['label'][rel['head_id']]
                rel['tail_id'] = relations['tail'][i]
                rel['tail'] = (entities['start'][rel['tail_id']], entities['end'][rel['tail_id']])
                rel['tail_type'] = entities['label'][rel['tail_id']]
                rel['type'] = 1
                pred_relations.append(rel)
            except Exception:
                continue
        return pred_relations

    # ---- forward ----
    def forward(self, hidden_states, entities, relations):
        hidden_states = jnp.asarray(hidden_states, jnp.float32)
        batch_size, n_words, _ = hidden_states.shape
        relations, entities = self.build_relation(relations, entities)

        r_list = [len(relations[b]['head']) for b in range(batch_size)]
        max_r = max(r_list)
        r_pad = max(R_BUCKET, -(-max_r // R_BUCKET) * R_BUCKET)

        # pack B_BLK docs per grid step; keep >= 2 parallel steps for v7x dual-TC
        b_blk = 2 if batch_size >= 4 else 1
        n_blocks = -(-batch_size // b_blk)
        m = b_blk * r_pad

        # host-side (numpy) index/label packing, already in the kernel's lane-dense layout
        pair_idx = np.zeros((n_blocks, 1, 2 * m), np.int32)   # [head flat idx | tail flat idx]
        pair_lab = np.zeros((n_blocks, 1, 2 * m), np.int32)
        rel_lab = np.full((n_blocks, 1, m), -1, np.int32)     # -1 marks padded rows
        for b in range(batch_size):
            blk, p = b // b_blk, b % b_blk
            r = r_list[b]
            h_ids = np.asarray(relations[b]['head'], np.int64)
            t_ids = np.asarray(relations[b]['tail'], np.int64)
            e_start = np.asarray(entities[b]['start'], np.int32)
            e_label = np.asarray(entities[b]['label'], np.int32)
            off = p * r_pad
            word_off = p * n_words
            pair_idx[blk, 0, off:off + r_pad] = word_off
            pair_idx[blk, 0, m + off:m + off + r_pad] = word_off
            pair_idx[blk, 0, off:off + r] = e_start[h_ids] + word_off
            pair_idx[blk, 0, m + off:m + off + r] = e_start[t_ids] + word_off
            pair_lab[blk, 0, off:off + r] = e_label[h_ids]
            pair_lab[blk, 0, m + off:m + off + r] = e_label[t_ids]
            rel_lab[blk, 0, off:off + r] = np.asarray(relations[b]['label'], np.int32)

        logits, total_loss = _device_forward(
            hidden_states, jnp.asarray(pair_idx), jnp.asarray(pair_lab),
            jnp.asarray(rel_lab), self.wslab, self.aux, b_blk=b_blk)

        # single device->host transfer for prediction decoding
        logits_host = np.asarray(jax.device_get(logits))
        all_pred_relations = []
        for b in range(batch_size):
            preds = self.get_predicted_relations(
                logits_host[b, :r_list[b]], relations[b], entities[b])
            all_pred_relations.append(preds)
        return total_loss, all_pred_relations


# -----------------------------------------------------------------------------
# Example run
# -----------------------------------------------------------------------------
if __name__ == "__main__":
    key = jax.random.PRNGKey(0)
    k_param, k_x = jax.random.split(key)

    batch_size, max_n_words = 2, 16
    hidden_states = jax.random.normal(k_x, (batch_size, max_n_words, HIDDEN), jnp.float32)

    entities = [
        {'start': [0, 2, 5, 7], 'end': [1, 4, 6, 9], 'label': [1, 2, 1, 2]},
        {'start': [1, 3], 'end': [2, 5], 'label': [1, 2]},   # <=2 entities -> dummy path
    ]
    relations = [
        {'head': [0], 'tail': [1]},
        {'head': [0], 'tail': [1]},
    ]

    decoder = RegionExtractionDecoderPallas(HIDDEN, k_param)
    loss, pred_relations = decoder.forward(hidden_states, entities, relations)
    jax.block_until_ready(loss)

    print("KERNEL_OK")
</pallas_src>

<mosaic_0001>
module attributes {stable_mosaic.version = 11 : i64} {
  func.func @_fused_kernel(%arg0: i32, %arg1: memref<1x1x256xi32, #tpu.memory_space<vmem>>, %arg2: memref<1x1x256xi32, #tpu.memory_space<vmem>>, %arg3: memref<1x1x128xi32, #tpu.memory_space<vmem>>, %arg4: memref<1x32x16xf32, #tpu.memory_space<vmem>>, %arg5: memref<168x128xbf16, #tpu.memory_space<vmem>>, %arg6: memref<136x8xf32, #tpu.memory_space<vmem>>, %arg7: memref<1x2x128xf32, #tpu.memory_space<vmem>>, %arg8: memref<1x1x128xf32, #tpu.memory_space<vmem>>) attributes {dimension_semantics = [#tpu.dimension_semantics<parallel>], iteration_bounds = array<i64: 2>, scalar_prefetch = 0 : i64, scratch_operands = 0 : i64, tpu.core_type = #tpu.core_type<tc>, window_params = [{transform_indices = @transform_0, window_bounds = array<i64: 1, 1, 256>}, {transform_indices = @transform_1, window_bounds = array<i64: 1, 1, 256>}, {transform_indices = @transform_2, window_bounds = array<i64: 1, 1, 128>}, {transform_indices = @transform_3, window_bounds = array<i64: 1, 32, 16>}, {pipeline_mode = #tpu.pipeline_mode<synchronous>, transform_indices = @transform_4, window_bounds = array<i64: 168, 128>}, {pipeline_mode = #tpu.pipeline_mode<synchronous>, transform_indices = @transform_5, window_bounds = array<i64: 136, 8>}, {transform_indices = @transform_6, window_bounds = array<i64: 1, 2, 128>}, {transform_indices = @transform_7, window_bounds = array<i64: 1, 1, 128>}]} {
    %c0 = arith.constant 0 : index
    %c0_0 = arith.constant 0 : index
    %c0_1 = arith.constant 0 : index
    %0 = vector.load %arg4[%c0, %c0_0, %c0_1] : memref<1x32x16xf32, #tpu.memory_space<vmem>>, vector<1x32x16xf32>
    %1 = vector.shape_cast %0 : vector<1x32x16xf32> to vector<32x16xf32>
    %c0_2 = arith.constant 0 : index
    %c0_3 = arith.constant 0 : index
    %c0_4 = arith.constant 0 : index
    %2 = vector.load %arg1[%c0_2, %c0_3, %c0_4] : memref<1x1x256xi32, #tpu.memory_space<vmem>>, vector<1x1x256xi32>
    %3 = vector.shape_cast %2 : vector<1x1x256xi32> to vector<1x256xi32>
    %c0_5 = arith.constant 0 : index
    %c0_6 = arith.constant 0 : index
    %c0_7 = arith.constant 0 : index
    %4 = vector.load %arg2[%c0_5, %c0_6, %c0_7] : memref<1x1x256xi32, #tpu.memory_space<vmem>>, vector<1x1x256xi32>
    %5 = vector.shape_cast %4 : vector<1x1x256xi32> to vector<1x256xi32>
    %c0_8 = arith.constant 0 : index
    %c0_9 = arith.constant 0 : index
    %c0_10 = arith.constant 0 : index
    %6 = vector.load %arg3[%c0_8, %c0_9, %c0_10] : memref<1x1x128xi32, #tpu.memory_space<vmem>>, vector<1x1x128xi32>
    %7 = vector.shape_cast %6 : vector<1x1x128xi32> to vector<1x128xi32>
    %8 = tpu.iota {dimensions = array<i32: 0>} : vector<16x256xi32>
    %9 = vector.broadcast %3 : vector<1x256xi32> to vector<16x256xi32>
    %10 = arith.cmpi eq, %8, %9 : vector<16x256xi32>
    %cst = arith.constant 1.000000e+00 : f32
    %cst_11 = arith.constant 0.000000e+00 : f32
    %11 = vector.broadcast %cst : f32 to vector<16x256xf32>
    %12 = vector.broadcast %cst_11 : f32 to vector<16x256xf32>
    %13 = arith.select %10, %11, %12 : vector<16x256xi1>, vector<16x256xf32>
    %cst_12 = arith.constant dense<0.000000e+00> : vector<32x256xf32>
    %14 = tpu.matmul %1, %13, %cst_12 {dimension_numbers = #tpu.dot_dimension_numbers<[1], [0], [0], [1], [0, 0, 1, 1], [], []>} : vector<32x16xf32>, vector<16x256xf32>, vector<32x256xf32> -> vector<32x256xf32>
    %15 = tpu.iota {dimensions = array<i32: 0>} : vector<8x256xi32>
    %16 = vector.broadcast %5 : vector<1x256xi32> to vector<8x256xi32>
    %17 = arith.cmpi eq, %15, %16 : vector<8x256xi32>
    %cst_13 = arith.constant 1.000000e+00 : f32
    %cst_14 = arith.constant 0.000000e+00 : f32
    %18 = vector.broadcast %cst_13 : f32 to vector<8x256xf32>
    %19 = vector.broadcast %cst_14 : f32 to vector<8x256xf32>
    %20 = arith.select %17, %18, %19 : vector<8x256xi1>, vector<8x256xf32>
    %c0_15 = arith.constant 0 : index
    %c0_16 = arith.constant 0 : index
    %21 = vector.load %arg6[%c0_15, %c0_16] : memref<136x8xf32, #tpu.memory_space<vmem>>, vector<32x8xf32>
    %cst_17 = arith.constant dense<0.000000e+00> : vector<32x256xf32>
    %22 = tpu.matmul %21, %20, %cst_17 {dimension_numbers = #tpu.dot_dimension_numbers<[1], [0], [0], [1], [0, 0, 1, 1], [], []>} : vector<32x8xf32>, vector<8x256xf32>, vector<32x256xf32> -> vector<32x256xf32>
    %23 = vector.extract_strided_slice %14 {offsets = [0, 0], sizes = [32, 128], strides = [1, 1]} : vector<32x256xf32> to vector<32x128xf32>
    %24 = vector.extract_strided_slice %22 {offsets = [0, 0], sizes = [32, 128], strides = [1, 1]} : vector<32x256xf32> to vector<32x128xf32>
    %25 = vector.extract_strided_slice %14 {offsets = [0, 128], sizes = [32, 128], strides = [1, 1]} : vector<32x256xf32> to vector<32x128xf32>
    %26 = vector.extract_strided_slice %22 {offsets = [0, 128], sizes = [32, 128], strides = [1, 1]} : vector<32x256xf32> to vector<32x128xf32>
    %27 = tpu.concatenate %23, %24, %25, %26 in 0 : vector<32x128xf32>, vector<32x128xf32>, vector<32x128xf32>, vector<32x128xf32> -> vector<128x128xf32>
    %c0_18 = arith.constant 0 : index
    %c0_19 = arith.constant 0 : index
    %28 = vector.load %arg5[%c0_18, %c0_19] : memref<168x128xbf16, #tpu.memory_space<vmem>>, vector<64x128xbf16>
    %c64 = arith.constant 64 : index
    %c0_20 = arith.constant 0 : index
    %29 = vector.load %arg5[%c64, %c0_20] : memref<168x128xbf16, #tpu.memory_space<vmem>>, vector<32x64xbf16>
    %c32 = arith.constant 32 : index
    %c0_21 = arith.constant 0 : index
    %30 = vector.load %arg6[%c32, %c0_21] : memref<136x8xf32, #tpu.memory_space<vmem>>, vector<64x1xf32>
    %c96 = arith.constant 96 : index
    %c0_22 = arith.constant 0 : index
    %31 = vector.load %arg6[%c96, %c0_22] : memref<136x8xf32, #tpu.memory_space<vmem>>, vector<32x1xf32>
    %32 = arith.truncf %27 : vector<128x128xf32> to vector<128x128xbf16>
    %cst_23 = arith.constant dense<0.000000e+00> : vector<64x128xf32>
    %33 = tpu.matmul %28, %32, %cst_23 {dimension_numbers = #tpu.dot_dimension_numbers<[1], [0], [0], [1], [0, 0, 1, 1], [], []>} : vector<64x128xbf16>, vector<128x128xbf16>, vector<64x128xf32> -> vector<64x128xf32>
    %34 = vector.broadcast %30 : vector<64x1xf32> to vector<64x128xf32>
    %35 = arith.addf %33, %34 : vector<64x128xf32>
    %cst_24 = arith.constant 0.000000e+00 : f32
    %36 = vector.broadcast %cst_24 : f32 to vector<64x128xf32>
    %37 = arith.maximumf %35, %36 : vector<64x128xf32>
    %38 = arith.truncf %37 : vector<64x128xf32> to vector<64x128xbf16>
    %cst_25 = arith.constant dense<0.000000e+00> : vector<32x128xf32>
    %39 = tpu.matmul %29, %38, %cst_25 {dimension_numbers = #tpu.dot_dimension_numbers<[1], [0], [0], [1], [0, 0, 1, 1], [], []>} : vector<32x64xbf16>, vector<64x128xbf16>, vector<32x128xf32> -> vector<32x128xf32>
    %40 = vector.broadcast %31 : vector<32x1xf32> to vector<32x128xf32>
    %41 = arith.addf %39, %40 : vector<32x128xf32>
    %cst_26 = arith.constant 0.000000e+00 : f32
    %42 = vector.broadcast %cst_26 : f32 to vector<32x128xf32>
    %43 = arith.maximumf %41, %42 : vector<32x128xf32>
    %c96_27 = arith.constant 96 : index
    %c0_28 = arith.constant 0 : index
    %44 = vector.load %arg5[%c96_27, %c0_28] : memref<168x128xbf16, #tpu.memory_space<vmem>>, vector<64x32xbf16>
    %c160 = arith.constant 160 : index
    %c0_29 = arith.constant 0 : index
    %45 = vector.load %arg5[%c160, %c0_29] : memref<168x128xbf16, #tpu.memory_space<vmem>>, vector<2x96xbf16>
    %c128 = arith.constant 128 : index
    %c0_30 = arith.constant 0 : index
    %46 = vector.load %arg6[%c128, %c0_30] : memref<136x8xf32, #tpu.memory_space<vmem>>, vector<2x1xf32>
    %47 = arith.truncf %43 : vector<32x128xf32> to vector<32x128xbf16>
    %cst_31 = arith.constant dense<0.000000e+00> : vector<64x128xf32>
    %48 = tpu.matmul %44, %47, %cst_31 {dimension_numbers = #tpu.dot_dimension_numbers<[1], [0], [0], [1], [0, 0, 1, 1], [], []>} : vector<64x32xbf16>, vector<32x128xbf16>, vector<64x128xf32> -> vector<64x128xf32>
    %49 = tpu.concatenate %43, %43 in 0 : vector<32x128xf32>, vector<32x128xf32> -> vector<64x128xf32>
    %50 = arith.mulf %48, %49 : vector<64x128xf32>
    %51 = tpu.concatenate %50, %43 in 0 : vector<64x128xf32>, vector<32x128xf32> -> vector<96x128xf32>
    %52 = arith.truncf %51 : vector<96x128xf32> to vector<96x128xbf16>
    %cst_32 = arith.constant dense<0.000000e+00> : vector<2x128xf32>
    %53 = tpu.matmul %45, %52, %cst_32 {dimension_numbers = #tpu.dot_dimension_numbers<[1], [0], [0], [1], [0, 0, 1, 1], [], []>} : vector<2x96xbf16>, vector<96x128xbf16>, vector<2x128xf32> -> vector<2x128xf32>
    %54 = vector.broadcast %46 : vector<2x1xf32> to vector<2x128xf32>
    %55 = arith.addf %53, %54 : vector<2x128xf32>
    %c0_33 = arith.constant 0 : index
    %c0_34 = arith.constant 0 : index
    %c0_35 = arith.constant 0 : index
    %56 = vector.load %arg7[%c0_33, %c0_34, %c0_35] : memref<1x2x128xf32, #tpu.memory_space<vmem>>, vector<1x2x128xf32>
    %57 = vector.shape_cast %56 : vector<1x2x128xf32> to vector<2x128xf32>
    %58 = vector.shape_cast %55 : vector<2x128xf32> to vector<1x2x128xf32>
    tpu.vector_store %arg7[%c0_33, %c0_34, %c0_35], %58 {strides = array<i32>} : memref<1x2x128xf32, #tpu.memory_space<vmem>>, vector<1x2x128xf32>,
    %59 = vector.extract_strided_slice %55 {offsets = [0, 0], sizes = [1, 128], strides = [1, 1]} : vector<2x128xf32> to vector<1x128xf32>
    %60 = vector.extract_strided_slice %55 {offsets = [1, 0], sizes = [1, 128], strides = [1, 1]} : vector<2x128xf32> to vector<1x128xf32>
    %c0_i32 = arith.constant 0 : i32
    %61 = vector.broadcast %c0_i32 : i32 to vector<1x128xi32>
    %62 = arith.cmpi sge, %7, %61 : vector<1x128xi32>
    %cst_36 = arith.constant 1.000000e+00 : f32
    %cst_37 = arith.constant 0.000000e+00 : f32
    %63 = vector.broadcast %cst_36 : f32 to vector<1x128xf32>
    %64 = vector.broadcast %cst_37 : f32 to vector<1x128xf32>
    %65 = arith.select %62, %63, %64 : vector<1x128xi1>, vector<1x128xf32>
    %c1_i32 = arith.constant 1 : i32
    %66 = vector.broadcast %c1_i32 : i32 to vector<1x128xi32>
    %67 = arith.cmpi eq, %7, %66 : vector<1x128xi32>
    %68 = arith.select %67, %60, %59 : vector<1x128xi1>, vector<1x128xf32>
    %69 = arith.maximumf %59, %60 : vector<1x128xf32>
    %70 = arith.subf %59, %69 : vector<1x128xf32>
    %71 = math.exp %70 : vector<1x128xf32>
    %72 = arith.subf %60, %69 : vector<1x128xf32>
    %73 = math.exp %72 : vector<1x128xf32>
    %74 = arith.addf %71, %73 : vector<1x128xf32>
    %75 = math.log %74 : vector<1x128xf32>
    %76 = arith.addf %69, %75 : vector<1x128xf32>
    %77 = arith.subf %76, %68 : vector<1x128xf32>
    %78 = arith.mulf %65, %77 : vector<1x128xf32>
    %c0_38 = arith.constant 0 : index
    %c0_39 = arith.constant 0 : index
    %c0_40 = arith.constant 0 : index
    %79 = vector.load %arg8[%c0_38, %c0_39, %c0_40] : memref<1x1x128xf32, #tpu.memory_space<vmem>>, vector<1x1x128xf32>
    %80 = vector.shape_cast %79 : vector<1x1x128xf32> to vector<1x128xf32>
    %81 = vector.shape_cast %78 : vector<1x128xf32> to vector<1x1x128xf32>
    tpu.vector_store %arg8[%c0_38, %c0_39, %c0_40], %81 {strides = array<i32>} : memref<1x1x128xf32, #tpu.memory_space<vmem>>, vector<1x1x128xf32>,
    return
  }
  func.func @transform_0(%arg0: i32) -> (i32, i32, i32) {
    %c0_i32 = arith.constant 0 : i32
    %c0_i32_0 = arith.constant 0 : i32
    %c0_i32_1 = arith.constant 0 : i32
    return %arg0, %c0_i32, %c0_i32_0 : i32, i32, i32
  }
  func.func @transform_1(%arg0: i32) -> (i32, i32, i32) {
    %c0_i32 = arith.constant 0 : i32
    %c0_i32_0 = arith.constant 0 : i32
    %c0_i32_1 = arith.constant 0 : i32
    return %arg0, %c0_i32, %c0_i32_0 : i32, i32, i32
  }
  func.func @transform_2(%arg0: i32) -> (i32, i32, i32) {
    %c0_i32 = arith.constant 0 : i32
    %c0_i32_0 = arith.constant 0 : i32
    %c0_i32_1 = arith.constant 0 : i32
    return %arg0, %c0_i32, %c0_i32_0 : i32, i32, i32
  }
  func.func @transform_3(%arg0: i32) -> (i32, i32, i32) {
    %c0_i32 = arith.constant 0 : i32
    %c0_i32_0 = arith.constant 0 : i32
    %c0_i32_1 = arith.constant 0 : i32
    return %arg0, %c0_i32, %c0_i32_0 : i32, i32, i32
  }
  func.func @transform_4(%arg0: i32) -> (i32, i32) {
    %c0_i32 = arith.constant 0 : i32
    %c0_i32_0 = arith.constant 0 : i32
    %c0_i32_1 = arith.constant 0 : i32
    return %c0_i32, %c0_i32_0 : i32, i32
  }
  func.func @transform_5(%arg0: i32) -> (i32, i32) {
    %c0_i32 = arith.constant 0 : i32
    %c0_i32_0 = arith.constant 0 : i32
    %c0_i32_1 = arith.constant 0 : i32
    return %c0_i32, %c0_i32_0 : i32, i32
  }
  func.func @transform_6(%arg0: i32) -> (i32, i32, i32) {
    %c0_i32 = arith.constant 0 : i32
    %c0_i32_0 = arith.constant 0 : i32
    %c0_i32_1 = arith.constant 0 : i32
    return %arg0, %c0_i32, %c0_i32_0 : i32, i32, i32
  }
  func.func @transform_7(%arg0: i32) -> (i32, i32, i32) {
    %c0_i32 = arith.constant 0 : i32
    %c0_i32_0 = arith.constant 0 : i32
    %c0_i32_1 = arith.constant 0 : i32
    return %arg0, %c0_i32, %c0_i32_0 : i32, i32, i32
  }
}

</mosaic_0001>

<llo_original>
// kernel: _device_forward.1
$region0: #{_device_forward.1}
  #allocation0 [shape = 'u32[]', space=smem, size = 0x4, offset = 0x4, fixed_abs, tag = 'smem constant byte address 0x4 - core index']
  #allocation1 [shape = 'u32[72,128]{1,0:T(1,128)}', space=vmem, size = 0x9000, scoped, tag = 'internal scratch']
  %s0 = inlined_call_operand.vmem [shape: s32[2,1,256], index: 0, kind: input, shape index: {}]
  %s1 = inlined_call_operand.vmem [shape: s32[2,1,256], index: 1, kind: input, shape index: {}]
  %s2 = inlined_call_operand.vmem [shape: s32[2,1,128], index: 2, kind: input, shape index: {}]
  %s3 = inlined_call_operand.vmem [shape: f32[2,32,16], index: 3, kind: input, shape index: {}]
  %s4 = inlined_call_operand.vmem [shape: bf16[168,128], index: 4, kind: input, shape index: {}]
  %s5 = inlined_call_operand.vmem [shape: f32[136,8], index: 5, kind: input, shape index: {}]
  %s6 = inlined_call_operand.hbm [shape: f32[2,2,128], index: 6, kind: output, shape index: {0}]
  %s7 = inlined_call_operand.vmem [shape: f32[2,1,128], index: 7, kind: output, shape index: {1}]
  %8 = xla_tuple %s6, %s7
  %s9 = sld [smem:[#allocation0]]
  $region65: #{_device_forward.1} parent=0
    _
  %s11 = ssub.s32 1, %s9
  %s12 = scalar_select 0, %s11, %s9
  $region1: #{_device_forward.1} parent=0
    #allocation2 [shape = 'u8[2048]{0}', space=vmem, size = 0x800, scoped, tag = 'output window, operand 0']
    #allocation3 [shape = 's32[2]{0}', space=sflag, size = 0x8, scoped, tag = 'scoped memory for _device_forward.1']
    %13 = vsyncpa [#allocation3], 0
    %s14 = scalar_lea.sflag [#allocation3], 1
    %15 = vsyncpa %s14, 0
    loop: start=0, step=1, limit=4
    $region2: #{_device_forward.1} parent=1 // loop_pre_header
      _
    $region3: #{_device_forward.1} parent=1 // loop_header
      %s17 = sphi 0, %s21
      %p18 = scmp.ge.s32.totalorder %s17, 4
      %s27 = sphi 0, %s29
      %s30 = sphi 0, %s27
      %s31 = sphi 0, %s30
      %s47 = sphi 0, %s31
      %s53 = sphi 0, %s55
      %s56 = sphi 0, %s53
      %s57 = sphi 0, %s56
      %s73 = sphi 0, %s57
      %s79 = sphi 0, %s81
      %s82 = sphi 0, %s79
      %s83 = sphi 0, %s82
      %s99 = sphi 0, %s83
      %s105 = sphi 0, %s107
      %s108 = sphi 0, %s105
      %s109 = sphi 0, %s108
      %s125 = sphi 0, %s109
      %s129 = sphi 0, %s129
      %s131 = sphi 0, %s129
      %s132 = sphi 0, %s131
      %s146 = sphi 0, %s132
      %s150 = sphi 0, %s150
      %s152 = sphi 0, %s150
      %s153 = sphi 0, %s152
      %s167 = sphi 0, %s153
      %s173 = sphi 0, %s175
      %s176 = sphi 0, %s173
      %s177 = sphi 0, %s176
      %s193 = sphi 0, %s177
      %s199 = sphi 0, %s201
      %s202 = sphi 0, %s199
      %s203 = sphi 0, %s202
      %s219 = sphi 0, %s203
    $region4: #{_device_forward.1} parent=1 // loop_header_branch
      %20 = sbr.rel (%p18) target = $region8
    $region5: #{_device_forward.1} parent=1 // loop_body
      %s22 = ssub.s32 %s17, 1
      %s23 = ssub.s32 %s17, 2
      %s24 = sadd.s32 %s17, 1
      %s25 = ssub.s32 %s17, %s24
      %p26 = scmp.eq.s32.totalorder %s25, 0
      %s28 = sadd.s32 %s27, 1
      %s29 = scalar_select %p26, %s27, %s28
      %p32 = pneg %p26
      %p33 = scmp.eq.s32.totalorder %s17, 1
      %p34 = por %p32, %p33
      %p35 = scmp.ne.s32.totalorder %s27, %s30
      %p36 = scmp.eq.s32.totalorder %s17, 0
      %p37 = por %p35, %p36
      %p38 = scmp.ne.s32.totalorder %s27, %s30
      %p39 = scmp.eq.s32.totalorder %s22, 1
      %p40 = por %p38, %p39
      %p41 = scmp.ne.s32.totalorder %s30, %s31
      %p42 = scmp.eq.s32.totalorder %s22, 0
      %p43 = por %p41, %p42
      %p44 = scmp.ne.s32.totalorder %s30, %s31
      %p45 = scmp.eq.s32.totalorder %s23, 1
      %p46 = por %p44, %p45
      %p48 = scmp.ne.s32.totalorder %s31, %s47
      %p49 = scmp.eq.s32.totalorder %s23, 0
      %p50 = por %p48, %p49
      %s51 = ssub.s32 %s17, %s24
      %p52 = scmp.eq.s32.totalorder %s51, 0
      %s54 = sadd.s32 %s53, 1
      %s55 = scalar_select %p52, %s53, %s54
      %p58 = pneg %p52
      %p59 = scmp.eq.s32.totalorder %s17, 1
      %p60 = por %p58, %p59
      %p61 = scmp.ne.s32.totalorder %s53, %s56
      %p62 = scmp.eq.s32.totalorder %s17, 0
      %p63 = por %p61, %p62
      %p64 = scmp.ne.s32.totalorder %s53, %s56
      %p65 = scmp.eq.s32.totalorder %s22, 1
      %p66 = por %p64, %p65
      %p67 = scmp.ne.s32.totalorder %s56, %s57
      %p68 = scmp.eq.s32.totalorder %s22, 0
      %p69 = por %p67, %p68
      %p70 = scmp.ne.s32.totalorder %s56, %s57
      %p71 = scmp.eq.s32.totalorder %s23, 1
      %p72 = por %p70, %p71
      %p74 = scmp.ne.s32.totalorder %s57, %s73
      %p75 = scmp.eq.s32.totalorder %s23, 0
      %p76 = por %p74, %p75
      %s77 = ssub.s32 %s17, %s24
      %p78 = scmp.eq.s32.totalorder %s77, 0
      %s80 = sadd.s32 %s79, 1
      %s81 = scalar_select %p78, %s79, %s80
      %p84 = pneg %p78
      %p85 = scmp.eq.s32.totalorder %s17, 1
      %p86 = por %p84, %p85
      %p87 = scmp.ne.s32.totalorder %s79, %s82
      %p88 = scmp.eq.s32.totalorder %s17, 0
      %p89 = por %p87, %p88
      %p90 = scmp.ne.s32.totalorder %s79, %s82
      %p91 = scmp.eq.s32.totalorder %s22, 1
      %p92 = por %p90, %p91
      %p93 = scmp.ne.s32.totalorder %s82, %s83
      %p94 = scmp.eq.s32.totalorder %s22, 0
      %p95 = por %p93, %p94
      %p96 = scmp.ne.s32.totalorder %s82, %s83
      %p97 = scmp.eq.s32.totalorder %s23, 1
      %p98 = por %p96, %p97
      %p100 = scmp.ne.s32.totalorder %s83, %s99
      %p101 = scmp.eq.s32.totalorder %s23, 0
      %p102 = por %p100, %p101
      %s103 = ssub.s32 %s17, %s24
      %p104 = scmp.eq.s32.totalorder %s103, 0
      %s106 = sadd.s32 %s105, 1
      %s107 = scalar_select %p104, %s105, %s106
      %p110 = pneg %p104
      %p111 = scmp.eq.s32.totalorder %s17, 1
      %p112 = por %p110, %p111
      %p113 = scmp.ne.s32.totalorder %s105, %s108
      %p114 = scmp.eq.s32.totalorder %s17, 0
      %p115 = por %p113, %p114
      %p116 = scmp.ne.s32.totalorder %s105, %s108
      %p117 = scmp.eq.s32.totalorder %s22, 1
      %p118 = por %p116, %p117
      %p119 = scmp.ne.s32.totalorder %s108, %s109
      %p120 = scmp.eq.s32.totalorder %s22, 0
      %p121 = por %p119, %p120
      %p122 = scmp.ne.s32.totalorder %s108, %s109
      %p123 = scmp.eq.s32.totalorder %s23, 1
      %p124 = por %p122, %p123
      %p126 = scmp.ne.s32.totalorder %s109, %s125
      %p127 = scmp.eq.s32.totalorder %s23, 0
      %p128 = por %p126, %p127
      %s130 = sadd.s32 %s129, 1
      %p133 = scmp.eq.s32.totalorder %s17, 1
      %p134 = scmp.ne.s32.totalorder %s129, %s131
      %p135 = scmp.eq.s32.totalorder %s17, 0
      %p136 = por %p134, %p135
      %p137 = scmp.ne.s32.totalorder %s129, %s131
      %p138 = scmp.eq.s32.totalorder %s22, 1
      %p139 = por %p137, %p138
      %p140 = scmp.ne.s32.totalorder %s131, %s132
      %p141 = scmp.eq.s32.totalorder %s22, 0
      %p142 = por %p140, %p141
      %p143 = scmp.ne.s32.totalorder %s131, %s132
      %p144 = scmp.eq.s32.totalorder %s23, 1
      %p145 = por %p143, %p144
      %p147 = scmp.ne.s32.totalorder %s132, %s146
      %p148 = scmp.eq.s32.totalorder %s23, 0
      %p149 = por %p147, %p148
      %s151 = sadd.s32 %s150, 1
      %p154 = scmp.eq.s32.totalorder %s17, 1
      %p155 = scmp.ne.s32.totalorder %s150, %s152
      %p156 = scmp.eq.s32.totalorder %s17, 0
      %p157 = por %p155, %p156
      %p158 = scmp.ne.s32.totalorder %s150, %s152
      %p159 = scmp.eq.s32.totalorder %s22, 1
      %p160 = por %p158, %p159
      %p161 = scmp.ne.s32.totalorder %s152, %s153
      %p162 = scmp.eq.s32.totalorder %s22, 0
      %p163 = por %p161, %p162
      %p164 = scmp.ne.s32.totalorder %s152, %s153
      %p165 = scmp.eq.s32.totalorder %s23, 1
      %p166 = por %p164, %p165
      %p168 = scmp.ne.s32.totalorder %s153, %s167
      %p169 = scmp.eq.s32.totalorder %s23, 0
      %p170 = por %p168, %p169
      %s171 = ssub.s32 %s17, %s24
      %p172 = scmp.eq.s32.totalorder %s171, 0
      %s174 = sadd.s32 %s173, 1
      %s175 = scalar_select %p172, %s173, %s174
      %p178 = pneg %p172
      %p179 = scmp.eq.s32.totalorder %s17, 1
      %p180 = por %p178, %p179
      %p181 = scmp.ne.s32.totalorder %s173, %s176
      %p182 = scmp.eq.s32.totalorder %s17, 0
      %p183 = por %p181, %p182
      %p184 = scmp.ne.s32.totalorder %s173, %s176
      %p185 = scmp.eq.s32.totalorder %s22, 1
      %p186 = por %p184, %p185
      %p187 = scmp.ne.s32.totalorder %s176, %s177
      %p188 = scmp.eq.s32.totalorder %s22, 0
      %p189 = por %p187, %p188
      %p190 = scmp.ne.s32.totalorder %s176, %s177
      %p191 = scmp.eq.s32.totalorder %s23, 1
      %p192 = por %p190, %p191
      %p194 = scmp.ne.s32.totalorder %s177, %s193
      %p195 = scmp.eq.s32.totalorder %s23, 0
      %p196 = por %p194, %p195
      %s197 = ssub.s32 %s17, %s24
      %p198 = scmp.eq.s32.totalorder %s197, 0
      %s200 = sadd.s32 %s199, 1
      %s201 = scalar_select %p198, %s199, %s200
      %p204 = pneg %p198
      %p205 = scmp.eq.s32.totalorder %s17, 1
      %p206 = por %p204, %p205
      %p207 = scmp.ne.s32.totalorder %s199, %s202
      %p208 = scmp.eq.s32.totalorder %s17, 0
      %p209 = por %p207, %p208
      %p210 = scmp.ne.s32.totalorder %s199, %s202
      %p211 = scmp.eq.s32.totalorder %s22, 1
      %p212 = por %p210, %p211
      %p213 = scmp.ne.s32.totalorder %s202, %s203
      %p214 = scmp.eq.s32.totalorder %s22, 0
      %p215 = por %p213, %p214
      %p216 = scmp.ne.s32.totalorder %s202, %s203
      %p217 = scmp.eq.s32.totalorder %s23, 1
      %p218 = por %p216, %p217
      %p220 = scmp.ne.s32.totalorder %s203, %s219
      %p221 = scmp.eq.s32.totalorder %s23, 0
      %p222 = por %p220, %p221
      %p223 = scmp.le.s32.totalorder 1, %s17
      %p224 = scmp.lt.s32.totalorder %s17, 3
      %p225 = pnand %p223, %p224
      %p226 = pneg %p225
      // Predicated region
      $region9: #{_device_forward.1} parent=5 // pred_check
        _
      $region10: #{_device_forward.1} parent=5 // pred_check_branch
        %228 = sbr.rel (%p225) target = $region12
      $region11: #{_device_forward.1} parent=5 // pred_region
        %s229 = ssub.s32 %s17, 1
        // Predicated region
        $region13: #{_device_forward.1} parent=11 // pred_check
          %p230 = pneg %p142
        $region14: #{_device_forward.1} parent=11 // pred_check_branch
          %232 = sbr.rel (%p230) target = $region16
        $region15: #{_device_forward.1} parent=11 // pred_region
          _
        $region16: #{_device_forward.1} parent=11 // pred_fallthru
          _
        // Predicated region
        $region17: #{_device_forward.1} parent=11 // pred_check
          %p233 = pneg %p163
        $region18: #{_device_forward.1} parent=11 // pred_check_branch
          %235 = sbr.rel (%p233) target = $region20
        $region19: #{_device_forward.1} parent=11 // pred_region
          _
        $region20: #{_device_forward.1} parent=11 // pred_fallthru
          _
      $region12: #{_device_forward.1} parent=5 // pred_fallthru
        _
      %p236 = scmp.lt.s32.totalorder %s17, 2
      // Predicated region
      $region21: #{_device_forward.1} parent=5 // pred_check
        %p237 = pneg %p236
      $region22: #{_device_forward.1} parent=5 // pred_check_branch
        %239 = sbr.rel (%p237) target = $region24
      $region23: #{_device_forward.1} parent=5 // pred_region
        // Predicated region
        $region25: #{_device_forward.1} parent=23 // pred_check
          %p240 = pneg %p37
        $region26: #{_device_forward.1} parent=23 // pred_check_branch
          %242 = sbr.rel (%p240) target = $region28
        $region27: #{_device_forward.1} parent=23 // pred_region
          %p243 = scmp.lt.s32.totalorder %s17, 1
          %s244 = scalar_select %p243, %s17, 1
          %s245 = smul.addr %s244, 2
          %s246 = scalar_lea.vmem %s0, %s245
        $region28: #{_device_forward.1} parent=23 // pred_fallthru
          _
        // Predicated region
        $region29: #{_device_forward.1} parent=23 // pred_check
          %p247 = pneg %p63
        $region30: #{_device_forward.1} parent=23 // pred_check_branch
          %249 = sbr.rel (%p247) target = $region32
        $region31: #{_device_forward.1} parent=23 // pred_region
          %p250 = scmp.lt.s32.totalorder %s17, 1
          %s251 = scalar_select %p250, %s17, 1
          %s252 = smul.addr %s251, 2
          %s253 = scalar_lea.vmem %s1, %s252
        $region32: #{_device_forward.1} parent=23 // pred_fallthru
          _
        // Predicated region
        $region33: #{_device_forward.1} parent=23 // pred_check
          %p254 = pneg %p89
        $region34: #{_device_forward.1} parent=23 // pred_check_branch
          %256 = sbr.rel (%p254) target = $region36
        $region35: #{_device_forward.1} parent=23 // pred_region
          %p257 = scmp.lt.s32.totalorder %s17, 1
          %s258 = scalar_select %p257, %s17, 1
          %s259 = scalar_lea.vmem %s2, %s258
        $region36: #{_device_forward.1} parent=23 // pred_fallthru
          _
        // Predicated region
        $region37: #{_device_forward.1} parent=23 // pred_check
          %p260 = pneg %p115
        $region38: #{_device_forward.1} parent=23 // pred_check_branch
          %262 = sbr.rel (%p260) target = $region40
        $region39: #{_device_forward.1} parent=23 // pred_region
          %p263 = scmp.lt.s32.totalorder %s17, 1
          %s264 = scalar_select %p263, %s17, 1
          %s265 = smul.addr %s264, 4
          %s266 = smul.addr %s265, 8
          %s267 = scalar_lea.vmem %s3, %s266
        $region40: #{_device_forward.1} parent=23 // pred_fallthru
          _
      $region24: #{_device_forward.1} parent=5 // pred_fallthru
        _
      %p268 = scmp.le.s32.totalorder 1, %s17
      %p269 = scmp.lt.s32.totalorder %s17, 3
      %p270 = pnand %p268, %p269
      %p271 = pneg %p270
      // Predicated region
      $region41: #{_device_forward.1} parent=5 // pred_check
        _
      $region42: #{_device_forward.1} parent=5 // pred_check_branch
        %273 = sbr.rel (%p270) target = $region44
      $region43: #{_device_forward.1} parent=5 // pred_region
        %s274 = ssub.s32 %s17, 1
        %p275 = scmp.lt.s32.totalorder %s22, 1
        %s276 = scalar_select %p275, %s22, 1
        %s277 = smul.addr %s276, 2
        %s278 = scalar_lea.vmem %s0, %s277
        %p279 = pneg %p43
        %p280 = pneg %p40
        %p281 = scmp.lt.s32.totalorder %s22, 1
        %s282 = scalar_select %p281, %s22, 1
        %s283 = smul.addr %s282, 2
        %s284 = scalar_lea.vmem %s1, %s283
        %p285 = pneg %p69
        %p286 = pneg %p66
        %p287 = scmp.lt.s32.totalorder %s22, 1
        %s288 = scalar_select %p287, %s22, 1
        %s289 = scalar_lea.vmem %s2, %s288
        %p290 = pneg %p95
        %p291 = pneg %p92
        %p292 = scmp.lt.s32.totalorder %s22, 1
        %s293 = scalar_select %p292, %s22, 1
        %s294 = smul.addr %s293, 4
        %s295 = smul.addr %s294, 8
        %s296 = scalar_lea.vmem %s3, %s295
        %p297 = pneg %p121
        %p298 = pneg %p118
        %p299 = pneg %p142
        %p300 = pneg %p139
        %p301 = pneg %p163
        %p302 = pneg %p160
        %p303 = pneg %p189
        %p304 = pneg %p186
        %s305 = sand.u32 %s176, 1
        %s306 = scalar_lea.sflag [#allocation3], %s305
        %s307 = sand.u32 %s176, 1
        %s308 = smul.addr %s307, 2
        %s309 = scalar_lea.vmem [#allocation2], %s308
        %p310 = pneg %p215
        %p311 = pneg %p212
        %p312 = scmp.lt.s32.totalorder %s22, 1
        %s313 = scalar_select %p312, %s22, 1
        %s314 = scalar_lea.vmem %s7, %s313
        %p315 = scmp.lt.s32.totalorder %s22, 1
        %s316 = scalar_select %p315, %s22, 1
        %s317 = smul.addr %s316, 2
        %s318 = scalar_lea.vmem %s0, %s317
        %p319 = scmp.lt.s32.totalorder %s22, 1
        %s320 = scalar_select %p319, %s22, 1
        %s321 = smul.addr %s320, 2
        %s322 = scalar_lea.vmem %s1, %s321
        %p323 = scmp.lt.s32.totalorder %s22, 1
        %s324 = scalar_select %p323, %s22, 1
        %s325 = scalar_lea.vmem %s2, %s324
        %p326 = scmp.lt.s32.totalorder %s22, 1
        %s327 = scalar_select %p326, %s22, 1
        %s328 = smul.addr %s327, 4
        %s329 = smul.addr %s328, 8
        %s330 = scalar_lea.vmem %s3, %s329
        %p331 = scmp.lt.s32.totalorder %s22, 1
        %s332 = scalar_select %p331, %s22, 1
        %s333 = scalar_lea.vmem %s7, %s332
        %v335 = vld [vmem:[%s330] sm:$0xff]
        %v336 = vld [vmem:[%s330 + $0x8] sm:$0xff]
        %v337 = vld [vmem:[%s330 + $0x10] sm:$0xff]
        %v338 = vld [vmem:[%s330 + $0x18] sm:$0xff]
        %v339 = vld [vmem:[%s318] sm:$0x3]
        %v340 = vld [vmem:[%s322] sm:$0x3]
        %v341 = vld [vmem:[%s325] sm:$0x1]
        %v342 = vlaneseq
        %v343 = vshrl.u32 %v342, 7
        %v344 = vadd.s32 %v343, 8
        %v345 = vperm.slane %v339, 0
        %v346 = vperm.slane %v339, 1
        %vm347 = vcmp.eq.s32.totalorder %v343, %v345
        %vm348 = vcmp.eq.s32.totalorder %v343, %v346
        %vm349 = vcmp.eq.s32.totalorder %v344, %v345
        %vm350 = vcmp.eq.s32.totalorder %v344, %v346
        %v351 = vsel %vm347, 1.0, 0.0
        %v352 = vsel %vm348, 1.0, 0.0
        %v353 = vsel %vm349, 1.0, 0.0
        %v354 = vsel %vm350, 1.0, 0.0
        %vm355 = vcmask 130048
        %v357 = vsel %vm355, %v335, 0
        %v360 = vsel %vm355, %v336, 0
        %v363 = vsel %vm355, %v337, 0
        %v366 = vsel %vm355, %v338, 0
        %368 = vmatpush.msra.mxu0 0.0
        %369 = vmatpush.msra.mxu0 0.0
        %370 = vmatpush.msra.mxu0 0.0
        %371 = vmatpush.msra.mxu0 0.0
        %372 = vmatpush.msra.mxu0 0.0
        %373 = vmatpush.msra.mxu0 0.0
        %374 = vmatpush.msra.mxu0 0.0
        %375 = vmatpush.msra.mxu0 0.0
        %376 = vmatpush.msra.mxu0 0.0
        %377 = vmatpush.msra.mxu0 0.0
        %378 = vmatpush.msra.mxu0 0.0
        %379 = vmatpush.msra.mxu0 0.0
        %380 = vmatpush.msra.mxu0 0.0
        %381 = vmatpush.msra.mxu0 0.0
        %382 = vmatpush.msra.mxu0 %v353
        %383 = vmatpush.msra.mxu0 %v351
        %384 = vmatmul.f32.gmra.mxu0 %v357
        %v385 = vpop.f32.mrf.mxu0
        %v386 = vadd.f32 0.0, %v385
        %387 = vmatmul.f32.gmra.mxu0 %v360
        %v388 = vpop.f32.mrf.mxu0
        %v389 = vadd.f32 0.0, %v388
        %390 = vmatmul.f32.gmra.mxu0 %v363
        %v391 = vpop.f32.mrf.mxu0
        %v392 = vadd.f32 0.0, %v391
        %393 = vmatmul.f32.gmra.mxu0 %v366
        %v394 = vpop.f32.mrf.mxu0
        %v395 = vadd.f32 0.0, %v394
        %396 = vdwg.mxu0
        %397 = vmatpush.msra.mxu0 0.0
        %398 = vmatpush.msra.mxu0 0.0
        %399 = vmatpush.msra.mxu0 0.0
        %400 = vmatpush.msra.mxu0 0.0
        %401 = vmatpush.msra.mxu0 0.0
        %402 = vmatpush.msra.mxu0 0.0
        %403 = vmatpush.msra.mxu0 0.0
        %404 = vmatpush.msra.mxu0 0.0
        %405 = vmatpush.msra.mxu0 0.0
        %406 = vmatpush.msra.mxu0 0.0
        %407 = vmatpush.msra.mxu0 0.0
        %408 = vmatpush.msra.mxu0 0.0
        %409 = vmatpush.msra.mxu0 0.0
        %410 = vmatpush.msra.mxu0 0.0
        %411 = vmatpush.msra.mxu0 %v354
        %412 = vmatpush.msra.mxu0 %v352
        %413 = vmatmul.f32.gmra.mxu0 %v357
        %v414 = vpop.f32.mrf.mxu0
        %v415 = vadd.f32 0.0, %v414
        %416 = vmatmul.f32.gmra.mxu0 %v360
        %v417 = vpop.f32.mrf.mxu0
        %v418 = vadd.f32 0.0, %v417
        %419 = vmatmul.f32.gmra.mxu0 %v363
        %v420 = vpop.f32.mrf.mxu0
        %v421 = vadd.f32 0.0, %v420
        %422 = vmatmul.f32.gmra.mxu0 %v366
        %v423 = vpop.f32.mrf.mxu0
        %v424 = vadd.f32 0.0, %v423
        %425 = vdwg.mxu0
        %v426 = vperm.slane %v340, 0
        %v427 = vperm.slane %v340, 1
        %vm428 = vcmp.eq.s32.totalorder %v343, %v426
        %vm429 = vcmp.eq.s32.totalorder %v343, %v427
        %v430 = vsel %vm428, 1.0, 0.0
        %v431 = vsel %vm429, 1.0, 0.0
        %v432 = vld [vmem:[%s5] sm:$0xff]
        %v433 = vld [vmem:[%s5 + $0x8] sm:$0xff]
        %v434 = vld [vmem:[%s5 + $0x10] sm:$0xff]
        %v435 = vld [vmem:[%s5 + $0x18] sm:$0xff]
        %vm436 = vcmask 64512
        %v438 = vsel %vm436, %v432, 0
        %v441 = vsel %vm436, %v433, 0
        %v444 = vsel %vm436, %v434, 0
        %v447 = vsel %vm436, %v435, 0
        %449 = vmatpush.msra.mxu0 0.0
        %450 = vmatpush.msra.mxu0 0.0
        %451 = vmatpush.msra.mxu0 0.0
        %452 = vmatpush.msra.mxu0 0.0
        %453 = vmatpush.msra.mxu0 0.0
        %454 = vmatpush.msra.mxu0 0.0
        %455 = vmatpush.msra.mxu0 0.0
        %456 = vmatpush.msra.mxu0 0.0
        %457 = vmatpush.msra.mxu0 0.0
        %458 = vmatpush.msra.mxu0 0.0
        %459 = vmatpush.msra.mxu0 0.0
        %460 = vmatpush.msra.mxu0 0.0
        %461 = vmatpush.msra.mxu0 0.0
        %462 = vmatpush.msra.mxu0 0.0
        %463 = vmatpush.msra.mxu0 0.0
        %464 = vmatpush.msra.mxu0 %v430
        %465 = vmatmul.f32.gmra.mxu0 %v438
        %v466 = vpop.f32.mrf.mxu0
        %v467 = vadd.f32 0.0, %v466
        %468 = vmatmul.f32.gmra.mxu0 %v441
        %v469 = vpop.f32.mrf.mxu0
        %v470 = vadd.f32 0.0, %v469
        %471 = vmatmul.f32.gmra.mxu0 %v444
        %v472 = vpop.f32.mrf.mxu0
        %v473 = vadd.f32 0.0, %v472
        %474 = vmatmul.f32.gmra.mxu0 %v447
        %v475 = vpop.f32.mrf.mxu0
        %v476 = vadd.f32 0.0, %v475
        %477 = vdwg.mxu0
        %478 = vmatpush.msra.mxu0 0.0
        %479 = vmatpush.msra.mxu0 0.0
        %480 = vmatpush.msra.mxu0 0.0
        %481 = vmatpush.msra.mxu0 0.0
        %482 = vmatpush.msra.mxu0 0.0
        %483 = vmatpush.msra.mxu0 0.0
        %484 = vmatpush.msra.mxu0 0.0
        %485 = vmatpush.msra.mxu0 0.0
        %486 = vmatpush.msra.mxu0 0.0
        %487 = vmatpush.msra.mxu0 0.0
        %488 = vmatpush.msra.mxu0 0.0
        %489 = vmatpush.msra.mxu0 0.0
        %490 = vmatpush.msra.mxu0 0.0
        %491 = vmatpush.msra.mxu0 0.0
        %492 = vmatpush.msra.mxu0 0.0
        %493 = vmatpush.msra.mxu0 %v431
        %494 = vmatmul.f32.gmra.mxu0 %v438
        %v495 = vpop.f32.mrf.mxu0
        %v496 = vadd.f32 0.0, %v495
        %497 = vmatmul.f32.gmra.mxu0 %v441
        %v498 = vpop.f32.mrf.mxu0
        %v499 = vadd.f32 0.0, %v498
        %500 = vmatmul.f32.gmra.mxu0 %v444
        %v501 = vpop.f32.mrf.mxu0
        %v502 = vadd.f32 0.0, %v501
        %503 = vmatmul.f32.gmra.mxu0 %v447
        %v504 = vpop.f32.mrf.mxu0
        %v505 = vadd.f32 0.0, %v504
        %506 = vdwg.mxu0
        %v507 = vld [vmem:[%s4] sm:$0xf]
        %v508 = vld [vmem:[%s4 + $0x4] sm:$0xf]
        %v509 = vld [vmem:[%s4 + $0x8] sm:$0xf]
        %v510 = vld [vmem:[%s4 + $0xc] sm:$0xf]
        %v511 = vld [vmem:[%s4 + $0x10] sm:$0xf]
        %v512 = vld [vmem:[%s4 + $0x14] sm:$0xf]
        %v513 = vld [vmem:[%s4 + $0x18] sm:$0xf]
        %v514 = vld [vmem:[%s4 + $0x1c] sm:$0xf]
        %v515 = vld [vmem:[%s4 + $0x20] sm:$0xf]
        %v516 = vld [vmem:[%s4 + $0x24] sm:$0xf]
        %v517 = vld [vmem:[%s4 + $0x28] sm:$0xf]
        %v518 = vld [vmem:[%s4 + $0x2c] sm:$0xf]
        %v519 = vld [vmem:[%s5 + $0x20] sm:$0xff]
        %v520 = vld [vmem:[%s5 + $0x28] sm:$0xff]
        %v521 = vld [vmem:[%s5 + $0x30] sm:$0xff]
        %v522 = vld [vmem:[%s5 + $0x38] sm:$0xff]
        %v523 = vld [vmem:[%s5 + $0x40] sm:$0xff]
        %v524 = vld [vmem:[%s5 + $0x48] sm:$0xff]
        %v525 = vld [vmem:[%s5 + $0x50] sm:$0xff]
        %v526 = vld [vmem:[%s5 + $0x58] sm:$0xff]
        %v527 = vld [vmem:[%s5 + $0x60] sm:$0xff]
        %v528 = vld [vmem:[%s5 + $0x68] sm:$0xff]
        %v529 = vld [vmem:[%s5 + $0x70] sm:$0xff]
        %v530 = vld [vmem:[%s5 + $0x78] sm:$0xff]
        %v531 = vpack.c.bf16 %v389, %v386
        %v532 = vpack.c.bf16 %v395, %v392
        %v533 = vpack.c.bf16 %v470, %v467
        %v534 = vpack.c.bf16 %v476, %v473
        %v535 = vpack.c.bf16 %v418, %v415
        %v536 = vpack.c.bf16 %v424, %v421
        %v537 = vpack.c.bf16 %v499, %v496
        %v538 = vpack.c.bf16 %v505, %v502
        %540 = vset.pattern.permute.xlu0 0
        %541 = vperm.xlu0 %540, %v519
        %v542 = vpop.permute.xlu0 %541
        %545 = vset.pattern.permute.xlu0 0
        %546 = vperm.xlu0 %545, %v520
        %v547 = vpop.permute.xlu0 %546
        %550 = vset.pattern.permute.xlu0 0
        %551 = vperm.xlu0 %550, %v521
        %v552 = vpop.permute.xlu0 %551
        %555 = vset.pattern.permute.xlu0 0
        %556 = vperm.xlu0 %555, %v522
        %v557 = vpop.permute.xlu0 %556
        %560 = vset.pattern.permute.xlu0 0
        %561 = vperm.xlu0 %560, %v523
        %v562 = vpop.permute.xlu0 %561
        %565 = vset.pattern.permute.xlu0 0
        %566 = vperm.xlu0 %565, %v524
        %v567 = vpop.permute.xlu0 %566
        %570 = vset.pattern.permute.xlu0 0
        %571 = vperm.xlu0 %570, %v525
        %v572 = vpop.permute.xlu0 %571
        %575 = vset.pattern.permute.xlu0 0
        %576 = vperm.xlu0 %575, %v526
        %v577 = vpop.permute.xlu0 %576
        %v587 = vunpack.c.l.b16 %v507
        %v588 = vunpack.c.l.b16 %v508
        %v589 = vunpack.c.l.b16 %v509
        %v590 = vunpack.c.l.b16 %v510
        %v591 = vunpack.c.l.b16 %v511
        %v592 = vunpack.c.l.b16 %v512
        %v593 = vunpack.c.l.b16 %v513
        %v594 = vunpack.c.l.b16 %v514
        %v595 = vpack.c.b16 %v588, %v587
        %v596 = vpack.c.b16 %v590, %v589
        %v597 = vpack.c.b16 %v592, %v591
        %v598 = vpack.c.b16 %v594, %v593
        %603 = vmatpush.bf16.msra.mxu0 %v538
        %604 = vmatpush.bf16.msra.mxu0 %v537
        %605 = vmatpush.bf16.msra.mxu0 %v536
        %606 = vmatpush.bf16.msra.mxu0 %v535
        %607 = vmatpush.bf16.msra.mxu0 %v534
        %608 = vmatpush.bf16.msra.mxu0 %v533
        %609 = vmatpush.bf16.msra.mxu0 %v532
        %610 = vmatpush.bf16.msra.mxu0 %v531
        %611 = vmatmul.bf16.gmra.mxu0 %v595
        %v612 = vpop.f32.mrf.mxu0
        %v613 = vadd.f32 %v542, %v612
        %v614 = vpop.f32.mrf.mxu0
        %v615 = vadd.f32 %v547, %v614
        %616 = vmatmul.bf16.gmra.mxu0 %v596
        %v617 = vpop.f32.mrf.mxu0
        %v618 = vadd.f32 %v552, %v617
        %v619 = vpop.f32.mrf.mxu0
        %v620 = vadd.f32 %v557, %v619
        %621 = vmatmul.bf16.gmra.mxu0 %v597
        %v622 = vpop.f32.mrf.mxu0
        %v623 = vadd.f32 %v562, %v622
        %v624 = vpop.f32.mrf.mxu0
        %v625 = vadd.f32 %v567, %v624
        %626 = vmatmul.bf16.gmra.mxu0 %v598
        %v627 = vpop.f32.mrf.mxu0
        %v628 = vadd.f32 %v572, %v627
        %v629 = vpop.f32.mrf.mxu0
        %v630 = vadd.f32 %v577, %v629
        %631 = vdwg.mxu0
        %v632 = vmax.f32 %v613, 0.0
        %v633 = vmax.f32 %v615, 0.0
        %v634 = vmax.f32 %v618, 0.0
        %v635 = vmax.f32 %v620, 0.0
        %v636 = vmax.f32 %v623, 0.0
        %v637 = vmax.f32 %v625, 0.0
        %v638 = vmax.f32 %v628, 0.0
        %v639 = vmax.f32 %v630, 0.0
        %v640 = vpack.c.bf16 %v633, %v632
        %v641 = vpack.c.bf16 %v635, %v634
        %v642 = vpack.c.bf16 %v637, %v636
        %v643 = vpack.c.bf16 %v639, %v638
        %645 = vset.pattern.permute.xlu0 0
        %646 = vperm.xlu0 %645, %v527
        %v647 = vpop.permute.xlu0 %646
        %650 = vset.pattern.permute.xlu0 0
        %651 = vperm.xlu0 %650, %v528
        %v652 = vpop.permute.xlu0 %651
        %655 = vset.pattern.permute.xlu0 0
        %656 = vperm.xlu0 %655, %v529
        %v657 = vpop.permute.xlu0 %656
        %660 = vset.pattern.permute.xlu0 0
        %661 = vperm.xlu0 %660, %v530
        %v662 = vpop.permute.xlu0 %661
        %v668 = vunpack.c.l.b16 %v515
        %v669 = vunpack.c.l.b16 %v516
        %v670 = vunpack.c.l.b16 %v517
        %v671 = vunpack.c.l.b16 %v518
        %v672 = vpack.c.b16 %v669, %v668
        %v673 = vpack.c.b16 %v671, %v670
        %vm674 = vcmask 523264
        %v676 = vsel %vm674, %v672, 0
        %v679 = vsel %vm674, %v673, 0
        %681 = vmatpush.bf16.msra.mxu0 0
        %682 = vmatpush.bf16.msra.mxu0 0
        %683 = vmatpush.bf16.msra.mxu0 0
        %684 = vmatpush.bf16.msra.mxu0 0
        %685 = vmatpush.bf16.msra.mxu0 %v643
        %686 = vmatpush.bf16.msra.mxu0 %v642
        %687 = vmatpush.bf16.msra.mxu0 %v641
        %688 = vmatpush.bf16.msra.mxu0 %v640
        %689 = vmatmul.bf16.gmra.mxu0 %v676
        %v690 = vpop.f32.mrf.mxu0
        %v691 = vadd.f32 %v647, %v690
        %v692 = vpop.f32.mrf.mxu0
        %v693 = vadd.f32 %v652, %v692
        %694 = vmatmul.bf16.gmra.mxu0 %v679
        %v695 = vpop.f32.mrf.mxu0
        %v696 = vadd.f32 %v657, %v695
        %v697 = vpop.f32.mrf.mxu0
        %v698 = vadd.f32 %v662, %v697
        %699 = vdwg.mxu0
        %v700 = vmax.f32 %v691, 0.0
        %v701 = vmax.f32 %v693, 0.0
        %v702 = vmax.f32 %v696, 0.0
        %v703 = vmax.f32 %v698, 0.0
        %v704 = vld [vmem:[%s4 + $0x30] sm:$0xf]
        %v705 = vld [vmem:[%s4 + $0x34] sm:$0xf]
        %v706 = vld [vmem:[%s4 + $0x38] sm:$0xf]
        %v707 = vld [vmem:[%s4 + $0x3c] sm:$0xf]
        %v708 = vld [vmem:[%s4 + $0x40] sm:$0xf]
        %v709 = vld [vmem:[%s4 + $0x44] sm:$0xf]
        %v710 = vld [vmem:[%s4 + $0x48] sm:$0xf]
        %v711 = vld [vmem:[%s4 + $0x4c] sm:$0xf]
        %v712 = vld [vmem:[%s4 + $0x50] sm:$0x1]
        %v713 = vld [vmem:[%s5 + $0x80] sm:$0x3]
        %v714 = vpack.c.bf16 %v701, %v700
        %v715 = vpack.c.bf16 %v703, %v702
        %v724 = vunpack.c.l.b16 %v704
        %v725 = vunpack.c.l.b16 %v705
        %v726 = vunpack.c.l.b16 %v706
        %v727 = vunpack.c.l.b16 %v707
        %v728 = vunpack.c.l.b16 %v708
        %v729 = vunpack.c.l.b16 %v709
        %v730 = vunpack.c.l.b16 %v710
        %v731 = vunpack.c.l.b16 %v711
        %v732 = vpack.c.b16 %v725, %v724
        %v733 = vpack.c.b16 %v727, %v726
        %v734 = vpack.c.b16 %v729, %v728
        %v735 = vpack.c.b16 %v731, %v730
        %vm736 = vcmask 261120
        %v738 = vsel %vm736, %v732, 0
        %v741 = vsel %vm736, %v733, 0
        %v744 = vsel %vm736, %v734, 0
        %v747 = vsel %vm736, %v735, 0
        %749 = vmatpush.bf16.msra.mxu0 0
        %750 = vmatpush.bf16.msra.mxu0 0
        %751 = vmatpush.bf16.msra.mxu0 0
        %752 = vmatpush.bf16.msra.mxu0 0
        %753 = vmatpush.bf16.msra.mxu0 0
        %754 = vmatpush.bf16.msra.mxu0 0
        %755 = vmatpush.bf16.msra.mxu0 %v715
        %756 = vmatpush.bf16.msra.mxu0 %v714
        %757 = vmatmul.bf16.gmra.mxu0 %v738
        %v758 = vpop.f32.mrf.mxu0
        %v759 = vadd.f32 0.0, %v758
        %v760 = vpop.f32.mrf.mxu0
        %v761 = vadd.f32 0.0, %v760
        %762 = vmatmul.bf16.gmra.mxu0 %v741
        %v763 = vpop.f32.mrf.mxu0
        %v764 = vadd.f32 0.0, %v763
        %v765 = vpop.f32.mrf.mxu0
        %v766 = vadd.f32 0.0, %v765
        %767 = vmatmul.bf16.gmra.mxu0 %v744
        %v768 = vpop.f32.mrf.mxu0
        %v769 = vadd.f32 0.0, %v768
        %v770 = vpop.f32.mrf.mxu0
        %v771 = vadd.f32 0.0, %v770
        %772 = vmatmul.bf16.gmra.mxu0 %v747
        %v773 = vpop.f32.mrf.mxu0
        %v774 = vadd.f32 0.0, %v773
        %v775 = vpop.f32.mrf.mxu0
        %v776 = vadd.f32 0.0, %v775
        %777 = vdwg.mxu0
        %v778 = vmul.f32 %v759, %v700
        %v779 = vmul.f32 %v761, %v701
        %v780 = vmul.f32 %v764, %v702
        %v781 = vmul.f32 %v766, %v703
        %v782 = vmul.f32 %v769, %v700
        %v783 = vmul.f32 %v771, %v701
        %v784 = vmul.f32 %v774, %v702
        %v785 = vmul.f32 %v776, %v703
        %v786 = vpack.c.bf16 %v779, %v778
        %v787 = vpack.c.bf16 %v781, %v780
        %v788 = vpack.c.bf16 %v783, %v782
        %v789 = vpack.c.bf16 %v785, %v784
        %791 = vset.pattern.permute.xlu0 0
        %792 = vperm.xlu0 %791, %v713
        %v793 = vpop.permute.xlu0 %792
        %vm795 = vcmask 785408
        %v797 = vsel %vm795, %v712, 0
        %799 = vmatpush.bf16.msra.mxu0 0
        %800 = vmatpush.bf16.msra.mxu0 0
        %801 = vmatpush.bf16.msra.mxu0 %v715
        %802 = vmatpush.bf16.msra.mxu0 %v714
        %803 = vmatpush.bf16.msra.mxu0 %v789
        %804 = vmatpush.bf16.msra.mxu0 %v788
        %805 = vmatpush.bf16.msra.mxu0 %v787
        %806 = vmatpush.bf16.msra.mxu0 %v786
        %807 = vmatmul.bf16.gmra.mxu0 %v797
        %v808 = vpop.f32.mrf.mxu0
        %v809 = vadd.f32 %v793, %v808
        %v810 = vpop.f32.mrf.mxu0
        %811 = vdwg.mxu0
        %812 = vst [vmem:[%s309] sm:$0x3] %v809
        %vm813 = vcmp.ge.s32.totalorder %v341, 0
        %v814 = vsel %vm813, 1.0, 0.0
        %vm815 = vcmp.eq.s32.totalorder %v341, 1
        %817 = vst [vmem:[#allocation1] sm:$0xff] %v809
        %s818 = scalar_lea.vmem [#allocation1], 1
        %v819 = vld [vmem:[%s818] ss:$9 sm:$0xff]
        %v821 = vsel %vm815, %v819, %v809
        %v822 = vrot.slane %v809, 1
        %v824 = vmax.f32 %v809, %v822
        %v825 = vsub.f32 %v809, %v824
        %v826 = vmul.f32 %v825, 1.442695
        %v827 = vpow.pop %v826
        %v829 = vrot.slane %v824, 7
        %v831 = vsub.f32 %v809, %v829
        %v832 = vmul.f32 %v831, 1.442695
        %v833 = vpow.pop %v832
        %v835 = vrot.slane %v833, 1
        %v837 = vadd.f32 %v827, %v835
        %v838 = vlog2.pop %v837
        %v839 = vmul.f32 %v838, 0.6931472
        %v840 = vadd.f32 %v824, %v839
        %v841 = vsub.f32 %v840, %v821
        %v842 = vmul.f32 %v814, %v841
        %843 = vst [vmem:[%s333] sm:$0x1] %v842
        %s844 = sand.u32 %s176, 1
        %s845 = scalar_lea.sflag [#allocation3], %s844
        %s846 = sand.u32 %s176, 1
        %s847 = smul.addr %s846, 2
        %s848 = scalar_lea.vmem [#allocation2], %s847
        %p849 = scmp.lt.s32.totalorder %s22, 1
        %s850 = scalar_select %p849, %s22, 1
        %s851 = scalar_lea.vmem %s7, %s850
        // Predicated region
        $region45: #{_device_forward.1} parent=43 // pred_check
          %p852 = pneg %p186
        $region46: #{_device_forward.1} parent=43 // pred_check_branch
          %854 = sbr.rel (%p852) target = $region48
        $region47: #{_device_forward.1} parent=43 // pred_region
          %856 = vsyncadd %s845, 0
          %s857 = smul.addr %s22, 2
          %s858 = scalar_lea.hbm %s6, %s857
          %s860 = sshll.u32 %s848, 4
          %s861 = int_to_ptr.vmem [resolvable:$true] %s860
          %s862 = sshll.u32 %s858, 4
          %s863 = int_to_ptr.hbm [resolvable:$true] %s862
          %865 = dma.vmem_to_hbm [thread:$0]  %s861, 32, %s863, %s845
        $region48: #{_device_forward.1} parent=43 // pred_fallthru
          _
        // Predicated region
        $region49: #{_device_forward.1} parent=43 // pred_check
          %p866 = pneg %p212
        $region50: #{_device_forward.1} parent=43 // pred_check_branch
          %868 = sbr.rel (%p866) target = $region52
        $region51: #{_device_forward.1} parent=43 // pred_region
          _
        $region52: #{_device_forward.1} parent=43 // pred_fallthru
          _
      $region44: #{_device_forward.1} parent=5 // pred_fallthru
        _
      %p869 = scmp.le.s32.totalorder 2, %s17
      // Predicated region
      $region53: #{_device_forward.1} parent=5 // pred_check
        %p870 = pneg %p869
      $region54: #{_device_forward.1} parent=5 // pred_check_branch
        %872 = sbr.rel (%p870) target = $region56
      $region55: #{_device_forward.1} parent=5 // pred_region
        %s873 = ssub.s32 %s17, 2
        // Predicated region
        $region57: #{_device_forward.1} parent=55 // pred_check
          %p874 = pneg %p192
        $region58: #{_device_forward.1} parent=55 // pred_check_branch
          %876 = sbr.rel (%p874) target = $region60
        $region59: #{_device_forward.1} parent=55 // pred_region
          %s877 = sand.u32 %s177, 1
          %s878 = scalar_lea.sflag [#allocation3], %s877
          %s879 = sand.u32 %s177, 1
          %s880 = smul.addr %s879, 2
          %s881 = scalar_lea.vmem [#allocation2], %s880
          %883 = dma.done %s878, 32
        $region60: #{_device_forward.1} parent=55 // pred_fallthru
          _
        // Predicated region
        $region61: #{_device_forward.1} parent=55 // pred_check
          %p884 = pneg %p218
        $region62: #{_device_forward.1} parent=55 // pred_check_branch
          %886 = sbr.rel (%p884) target = $region64
        $region63: #{_device_forward.1} parent=55 // pred_region
          %p887 = scmp.lt.s32.totalorder %s23, 1
          %s888 = scalar_select %p887, %s23, 1
          %s889 = scalar_lea.vmem %s7, %s888
        $region64: #{_device_forward.1} parent=55 // pred_fallthru
          _
      $region56: #{_device_forward.1} parent=5 // pred_fallthru
        _
    $region6: #{_device_forward.1} parent=1 // loop_footer
      %s21 = sadd.s32 1, %s17
    $region7: #{_device_forward.1} parent=1 // loop_footer_branch
      %16 = sbr.rel target = $region3
    $region8: #{_device_forward.1} parent=1 // loop_exit
      _
    %890 = vsyncpa [#allocation3], 1
    %s891 = scalar_lea.sflag [#allocation3], 1
    %892 = vsyncpa %s891, 1

</llo_original>
